<compile_context>
chip_gen: v5e
topology: v5e:2x2
jax: 0.10.0
libtpu: 0.0.40
codegen_flags: <defaults>
</compile_context>

<pallas_src>
import functools

import numpy as np
import jax
import jax.numpy as jnp
from jax import lax
from jax.experimental import pallas as pl
from jax.experimental.pallas import tpu as pltpu


def _round_up(x, m):
    return ((x + m - 1) // m) * m


def _pick_batch_block(n):
    """Batch elements folded into one grid step.

    Tiny batches: fold everything into one step (the ~0.35us per-step pipeline
    overhead dominates at this problem size).  Larger batches: keep >= 2 grid
    steps marked "parallel" so both v7x TensorCores get a slice of the batch.
    """
    nb = n if n < 4 else -(-n // 2)
    while n % nb:
        nb -= 1
    return nb


def _boundary_masks(H, W, C, rate, dtype):
    """(9, C, H*W) {0,1} masks realizing the conv's zero padding for each tap."""
    HW = H * W
    pos = np.arange(HW)
    row, col = pos // W, pos % W
    masks = np.zeros((9, HW), np.float32)
    for dy in range(3):
        oy = (dy - 1) * rate
        for dx in range(3):
            ox = (dx - 1) * rate
            valid = np.ones(HW, bool)
            if oy < 0:
                valid &= row >= -oy
            elif oy > 0:
                valid &= row < H - oy
            if ox < 0:
                valid &= col >= -ox
            elif ox > 0:
                valid &= col < W - ox
            masks[dy * 3 + dx] = valid
    # Pre-broadcast over channels so the in-kernel mask apply is a plain
    # full-shape multiply (no per-iteration broadcast_in_dim).  For very large
    # C this could stay (9, 1, HW) instead.
    masks = np.broadcast_to(masks.reshape(9, 1, HW), (9, C, HW))
    return jnp.asarray(masks, dtype=dtype)


def _stack_weights(weight_oihw, bias, C_pad, K, dtype):
    """(Cout, K) stacked tap weights; column 9*C_pad carries the bias."""
    C_out, C_in = weight_oihw.shape[0], weight_oihw.shape[1]
    w_taps = jnp.transpose(weight_oihw, (2, 3, 0, 1))        # (3,3,Cout,Cin)
    w_stk = jnp.zeros((C_out, K), jnp.float32)
    for dy in range(3):
        for dx in range(3):
            t = dy * 3 + dx
            w_stk = w_stk.at[:, t * C_pad:t * C_pad + C_in].set(w_taps[dy, dx])
    w_stk = w_stk.at[:, 9 * C_pad].set(bias)                  # bias column
    return w_stk.astype(dtype)


def _atrous_conv_kernel(x_ref, w_ref, m_ref, o_ref, taps_ref, *,
                        H, W, C, C_pad, rate, nb, compute_dtype):
    """One grid step = `nb` batch elements.

    x_ref:    (nb, C, H*W)   lane-dense inputs
    w_ref:    (C, K)         stacked tap weights (+ bias column)
    m_ref:    (9, C, H*W)    zero-padding masks
    o_ref:    (nb, C, H*W)   outputs
    taps_ref: (K, H*W) VMEM  stacked-tap scratch (K = 9*C_pad + pad, incl. ones row)
    """
    HW = H * W
    K = taps_ref.shape[0]
    ones_row = 9 * C_pad

    # Constant rows of the stacked-tap matrix: zero channel-padding rows plus
    # the "ones" row that folds the bias into the matmul.  Re-written every
    # grid step (trivial) so megacore grid splitting stays correct.
    ridx = lax.broadcasted_iota(jnp.int32, (K, HW), 0)
    taps_ref[...] = (ridx == ones_row).astype(compute_dtype)

    # Hoisted once per grid step (amortized over the nb batch elements).
    w = w_ref[...]                                  # (C, K)
    masks = m_ref[...]                              # (9, C, HW)

    def body(b, carry):
        x = x_ref[b].astype(compute_dtype)          # (C, HW)
        for dy in range(3):
            oy = (dy - 1) * rate                    # dilated row offset
            for dx in range(3):
                ox = (dx - 1) * rate                # dilated col offset
                t = dy * 3 + dx
                # Source pixel for output p is flat index p + (oy*W + ox):
                # realized as a static lane rotation (XLU) + precomputed
                # boundary mask (this IS the conv's `padding=rate`).
                shift = (-(oy * W + ox)) % HW
                tap = pltpu.roll(x, shift=shift, axis=1) if shift else x
                tap = tap * masks[t]
                taps_ref[pl.ds(t * C_pad, C), :] = tap
        # Single MXU matmul for all 9 taps (+ bias) of this batch element;
        # accumulation happens inside the MXU in f32.
        out = jnp.dot(w, taps_ref[...], preferred_element_type=jnp.float32)
        o_ref[b] = out.astype(o_ref.dtype)
        return carry

    lax.fori_loop(0, nb, body, 0, unroll=True)


def atrous_conv(x_nchw, weight_oihw, bias, rate, *,
                batch_block=None, compute_dtype=jnp.float32):
    """Forward pass of atrous_Conv.  x_nchw: (N, C, H, W)."""
    N, C, H, W = x_nchw.shape
    assert weight_oihw.shape == (C, C, 3, 3)
    HW = H * W

    sublane = 16 if compute_dtype == jnp.bfloat16 else 8
    C_pad = _round_up(C, sublane)                   # per-tap sublane alignment
    K = 9 * C_pad + sublane                         # + aligned block holding the ones row

    nb = batch_block if batch_block is not None else _pick_batch_block(N)
    assert N % nb == 0, "batch_block must divide N"

    x_flat = x_nchw.reshape(N, C, HW)               # free reshape
    w_stk = _stack_weights(weight_oihw, bias, C_pad, K, compute_dtype)
    masks = _boundary_masks(H, W, C, rate, compute_dtype)

    kernel = functools.partial(
        _atrous_conv_kernel, H=H, W=W, C=C, C_pad=C_pad, rate=rate, nb=nb,
        compute_dtype=compute_dtype)

    out_flat = pl.pallas_call(
        kernel,
        out_shape=jax.ShapeDtypeStruct((N, C, HW), x_nchw.dtype),
        grid=(N // nb,),
        in_specs=[
            pl.BlockSpec((nb, C, HW), lambda n: (n, 0, 0)),
            pl.BlockSpec((C, K), lambda n: (0, 0)),
            pl.BlockSpec((9, C, HW), lambda n: (0, 0, 0)),
        ],
        out_specs=pl.BlockSpec((nb, C, HW), lambda n: (n, 0, 0)),
        scratch_shapes=[pltpu.VMEM((K, HW), compute_dtype)],
        compiler_params=pltpu.CompilerParams(
            dimension_semantics=("parallel",)),
    )(x_flat, w_stk, masks)

    return out_flat.reshape(N, C, H, W)


def _reference(x_nchw, weight_oihw, bias, rate):
    out = lax.conv_general_dilated(
        x_nchw, weight_oihw,
        window_strides=(1, 1),
        padding=((rate, rate), (rate, rate)),
        rhs_dilation=(rate, rate),
        dimension_numbers=("NCHW", "OIHW", "NCHW"),
    )
    return out + bias.reshape(1, -1, 1, 1)


if __name__ == "__main__":
    # Module config: inplanes = planes = 4, rate = 2.
    N, C, H, W = 2, 4, 16, 16
    rate = 2

    key = jax.random.PRNGKey(0)
    kx, kw, kb = jax.random.split(key, 3)
    x = jax.random.normal(kx, (N, C, H, W), dtype=jnp.float32)
    # Deterministic synthetic parameters (shapes from nn.Conv2d(C, C, 3)).
    weight = jax.random.normal(kw, (C, C, 3, 3), dtype=jnp.float32) * 0.1
    bias = jax.random.normal(kb, (C,), dtype=jnp.float32) * 0.1

    out = atrous_conv(x, weight, bias, rate)
    out = jax.block_until_ready(out)

    ref = _reference(x, weight, bias, rate)
    assert out.shape == (N, C, H, W)
    assert jnp.allclose(out, ref, atol=1e-4, rtol=1e-4), "mismatch vs reference"

    print("KERNEL_OK")
</pallas_src>

<mosaic_0001>
module attributes {stable_mosaic.version = 11 : i64} {
  func.func @_atrous_conv_kernel(%arg0: i32, %arg1: memref<2x4x256xf32, #tpu.memory_space<vmem>>, %arg2: memref<4x80xf32, #tpu.memory_space<vmem>>, %arg3: memref<9x4x256xf32, #tpu.memory_space<vmem>>, %arg4: memref<2x4x256xf32, #tpu.memory_space<vmem>>, %arg5: memref<80x256xf32, #tpu.memory_space<vmem>>) attributes {dimension_semantics = [#tpu.dimension_semantics<parallel>], iteration_bounds = array<i64: 1>, scalar_prefetch = 0 : i64, scratch_operands = 1 : i64, tpu.core_type = #tpu.core_type<tc>, window_params = [{transform_indices = @transform_0, window_bounds = array<i64: 2, 4, 256>}, {pipeline_mode = #tpu.pipeline_mode<synchronous>, transform_indices = @transform_1, window_bounds = array<i64: 4, 80>}, {pipeline_mode = #tpu.pipeline_mode<synchronous>, transform_indices = @transform_2, window_bounds = array<i64: 9, 4, 256>}, {transform_indices = @transform_3, window_bounds = array<i64: 2, 4, 256>}]} {
    %0 = tpu.iota {dimensions = array<i32: 0>} : vector<80x256xi32>
    %c72_i32 = arith.constant 72 : i32
    %1 = vector.broadcast %c72_i32 : i32 to vector<80x256xi32>
    %2 = arith.cmpi eq, %0, %1 : vector<80x256xi32>
    %3 = arith.extui %2 : vector<80x256xi1> to vector<80x256xi32>
    %4 = arith.sitofp %3 : vector<80x256xi32> to vector<80x256xf32>
    %c0 = arith.constant 0 : index
    %c0_0 = arith.constant 0 : index
    %5 = vector.load %arg5[%c0, %c0_0] : memref<80x256xf32, #tpu.memory_space<vmem>>, vector<80x256xf32>
    tpu.vector_store %arg5[%c0, %c0_0], %4 {strides = array<i32>} : memref<80x256xf32, #tpu.memory_space<vmem>>, vector<80x256xf32>,
    %c0_1 = arith.constant 0 : index
    %c0_2 = arith.constant 0 : index
    %6 = vector.load %arg2[%c0_1, %c0_2] : memref<4x80xf32, #tpu.memory_space<vmem>>, vector<4x80xf32>
    %c0_3 = arith.constant 0 : index
    %c0_4 = arith.constant 0 : index
    %c0_5 = arith.constant 0 : index
    %7 = vector.load %arg3[%c0_3, %c0_4, %c0_5] : memref<9x4x256xf32, #tpu.memory_space<vmem>>, vector<9x4x256xf32>
    %c0_i32 = arith.constant 0 : i32
    %8 = arith.index_cast %c0_i32 : i32 to index
    %c0_6 = arith.constant 0 : index
    %c0_7 = arith.constant 0 : index
    %9 = vector.load %arg1[%8, %c0_6, %c0_7] : memref<2x4x256xf32, #tpu.memory_space<vmem>>, vector<1x4x256xf32>
    %10 = vector.shape_cast %9 : vector<1x4x256xf32> to vector<4x256xf32>
    %c34_i32 = arith.constant 34 : i32
    %11 = tpu.dynamic_rotate %10 by %c34_i32 dim 1 : vector<4x256xf32>, i32 -> vector<4x256xf32>
    %12 = vector.extract_strided_slice %7 {offsets = [0, 0, 0], sizes = [1, 4, 256], strides = [1, 1, 1]} : vector<9x4x256xf32> to vector<1x4x256xf32>
    %13 = vector.shape_cast %12 : vector<1x4x256xf32> to vector<4x256xf32>
    %14 = arith.mulf %11, %13 : vector<4x256xf32>
    %c0_8 = arith.constant 0 : index
    %c0_9 = arith.constant 0 : index
    %15 = vector.load %arg5[%c0_8, %c0_9] : memref<80x256xf32, #tpu.memory_space<vmem>>, vector<4x256xf32>
    tpu.vector_store %arg5[%c0_8, %c0_9], %14 {strides = array<i32>} : memref<80x256xf32, #tpu.memory_space<vmem>>, vector<4x256xf32>,
    %c32_i32 = arith.constant 32 : i32
    %16 = tpu.dynamic_rotate %10 by %c32_i32 dim 1 : vector<4x256xf32>, i32 -> vector<4x256xf32>
    %17 = vector.extract_strided_slice %7 {offsets = [1, 0, 0], sizes = [1, 4, 256], strides = [1, 1, 1]} : vector<9x4x256xf32> to vector<1x4x256xf32>
    %18 = vector.shape_cast %17 : vector<1x4x256xf32> to vector<4x256xf32>
    %19 = arith.mulf %16, %18 : vector<4x256xf32>
    %c8 = arith.constant 8 : index
    %c0_10 = arith.constant 0 : index
    %20 = vector.load %arg5[%c8, %c0_10] : memref<80x256xf32, #tpu.memory_space<vmem>>, vector<4x256xf32>
    tpu.vector_store %arg5[%c8, %c0_10], %19 {strides = array<i32>} : memref<80x256xf32, #tpu.memory_space<vmem>>, vector<4x256xf32>,
    %c30_i32 = arith.constant 30 : i32
    %21 = tpu.dynamic_rotate %10 by %c30_i32 dim 1 : vector<4x256xf32>, i32 -> vector<4x256xf32>
    %22 = vector.extract_strided_slice %7 {offsets = [2, 0, 0], sizes = [1, 4, 256], strides = [1, 1, 1]} : vector<9x4x256xf32> to vector<1x4x256xf32>
    %23 = vector.shape_cast %22 : vector<1x4x256xf32> to vector<4x256xf32>
    %24 = arith.mulf %21, %23 : vector<4x256xf32>
    %c16 = arith.constant 16 : index
    %c0_11 = arith.constant 0 : index
    %25 = vector.load %arg5[%c16, %c0_11] : memref<80x256xf32, #tpu.memory_space<vmem>>, vector<4x256xf32>
    tpu.vector_store %arg5[%c16, %c0_11], %24 {strides = array<i32>} : memref<80x256xf32, #tpu.memory_space<vmem>>, vector<4x256xf32>,
    %c2_i32 = arith.constant 2 : i32
    %26 = tpu.dynamic_rotate %10 by %c2_i32 dim 1 : vector<4x256xf32>, i32 -> vector<4x256xf32>
    %27 = vector.extract_strided_slice %7 {offsets = [3, 0, 0], sizes = [1, 4, 256], strides = [1, 1, 1]} : vector<9x4x256xf32> to vector<1x4x256xf32>
    %28 = vector.shape_cast %27 : vector<1x4x256xf32> to vector<4x256xf32>
    %29 = arith.mulf %26, %28 : vector<4x256xf32>
    %c24 = arith.constant 24 : index
    %c0_12 = arith.constant 0 : index
    %30 = vector.load %arg5[%c24, %c0_12] : memref<80x256xf32, #tpu.memory_space<vmem>>, vector<4x256xf32>
    tpu.vector_store %arg5[%c24, %c0_12], %29 {strides = array<i32>} : memref<80x256xf32, #tpu.memory_space<vmem>>, vector<4x256xf32>,
    %31 = vector.extract_strided_slice %7 {offsets = [4, 0, 0], sizes = [1, 4, 256], strides = [1, 1, 1]} : vector<9x4x256xf32> to vector<1x4x256xf32>
    %32 = vector.shape_cast %31 : vector<1x4x256xf32> to vector<4x256xf32>
    %33 = arith.mulf %10, %32 : vector<4x256xf32>
    %c32 = arith.constant 32 : index
    %c0_13 = arith.constant 0 : index
    %34 = vector.load %arg5[%c32, %c0_13] : memref<80x256xf32, #tpu.memory_space<vmem>>, vector<4x256xf32>
    tpu.vector_store %arg5[%c32, %c0_13], %33 {strides = array<i32>} : memref<80x256xf32, #tpu.memory_space<vmem>>, vector<4x256xf32>,
    %c254_i32 = arith.constant 254 : i32
    %35 = tpu.dynamic_rotate %10 by %c254_i32 dim 1 : vector<4x256xf32>, i32 -> vector<4x256xf32>
    %36 = vector.extract_strided_slice %7 {offsets = [5, 0, 0], sizes = [1, 4, 256], strides = [1, 1, 1]} : vector<9x4x256xf32> to vector<1x4x256xf32>
    %37 = vector.shape_cast %36 : vector<1x4x256xf32> to vector<4x256xf32>
    %38 = arith.mulf %35, %37 : vector<4x256xf32>
    %c40 = arith.constant 40 : index
    %c0_14 = arith.constant 0 : index
    %39 = vector.load %arg5[%c40, %c0_14] : memref<80x256xf32, #tpu.memory_space<vmem>>, vector<4x256xf32>
    tpu.vector_store %arg5[%c40, %c0_14], %38 {strides = array<i32>} : memref<80x256xf32, #tpu.memory_space<vmem>>, vector<4x256xf32>,
    %c226_i32 = arith.constant 226 : i32
    %40 = tpu.dynamic_rotate %10 by %c226_i32 dim 1 : vector<4x256xf32>, i32 -> vector<4x256xf32>
    %41 = vector.extract_strided_slice %7 {offsets = [6, 0, 0], sizes = [1, 4, 256], strides = [1, 1, 1]} : vector<9x4x256xf32> to vector<1x4x256xf32>
    %42 = vector.shape_cast %41 : vector<1x4x256xf32> to vector<4x256xf32>
    %43 = arith.mulf %40, %42 : vector<4x256xf32>
    %c48 = arith.constant 48 : index
    %c0_15 = arith.constant 0 : index
    %44 = vector.load %arg5[%c48, %c0_15] : memref<80x256xf32, #tpu.memory_space<vmem>>, vector<4x256xf32>
    tpu.vector_store %arg5[%c48, %c0_15], %43 {strides = array<i32>} : memref<80x256xf32, #tpu.memory_space<vmem>>, vector<4x256xf32>,
    %c224_i32 = arith.constant 224 : i32
    %45 = tpu.dynamic_rotate %10 by %c224_i32 dim 1 : vector<4x256xf32>, i32 -> vector<4x256xf32>
    %46 = vector.extract_strided_slice %7 {offsets = [7, 0, 0], sizes = [1, 4, 256], strides = [1, 1, 1]} : vector<9x4x256xf32> to vector<1x4x256xf32>
    %47 = vector.shape_cast %46 : vector<1x4x256xf32> to vector<4x256xf32>
    %48 = arith.mulf %45, %47 : vector<4x256xf32>
    %c56 = arith.constant 56 : index
    %c0_16 = arith.constant 0 : index
    %49 = vector.load %arg5[%c56, %c0_16] : memref<80x256xf32, #tpu.memory_space<vmem>>, vector<4x256xf32>
    tpu.vector_store %arg5[%c56, %c0_16], %48 {strides = array<i32>} : memref<80x256xf32, #tpu.memory_space<vmem>>, vector<4x256xf32>,
    %c222_i32 = arith.constant 222 : i32
    %50 = tpu.dynamic_rotate %10 by %c222_i32 dim 1 : vector<4x256xf32>, i32 -> vector<4x256xf32>
    %51 = vector.extract_strided_slice %7 {offsets = [8, 0, 0], sizes = [1, 4, 256], strides = [1, 1, 1]} : vector<9x4x256xf32> to vector<1x4x256xf32>
    %52 = vector.shape_cast %51 : vector<1x4x256xf32> to vector<4x256xf32>
    %53 = arith.mulf %50, %52 : vector<4x256xf32>
    %c64 = arith.constant 64 : index
    %c0_17 = arith.constant 0 : index
    %54 = vector.load %arg5[%c64, %c0_17] : memref<80x256xf32, #tpu.memory_space<vmem>>, vector<4x256xf32>
    tpu.vector_store %arg5[%c64, %c0_17], %53 {strides = array<i32>} : memref<80x256xf32, #tpu.memory_space<vmem>>, vector<4x256xf32>,
    %c0_18 = arith.constant 0 : index
    %c0_19 = arith.constant 0 : index
    %55 = vector.load %arg5[%c0_18, %c0_19] : memref<80x256xf32, #tpu.memory_space<vmem>>, vector<80x256xf32>
    %cst = arith.constant dense<0.000000e+00> : vector<4x256xf32>
    %56 = tpu.matmul %6, %55, %cst {dimension_numbers = #tpu.dot_dimension_numbers<[1], [0], [0], [1], [0, 0, 1, 1], [], []>} : vector<4x80xf32>, vector<80x256xf32>, vector<4x256xf32> -> vector<4x256xf32>
    %57 = arith.index_cast %c0_i32 : i32 to index
    %c0_20 = arith.constant 0 : index
    %c0_21 = arith.constant 0 : index
    %58 = vector.load %arg4[%57, %c0_20, %c0_21] : memref<2x4x256xf32, #tpu.memory_space<vmem>>, vector<1x4x256xf32>
    %59 = vector.shape_cast %58 : vector<1x4x256xf32> to vector<4x256xf32>
    %60 = vector.shape_cast %56 : vector<4x256xf32> to vector<1x4x256xf32>
    tpu.vector_store %arg4[%57, %c0_20, %c0_21], %60 {strides = array<i32>} : memref<2x4x256xf32, #tpu.memory_space<vmem>>, vector<1x4x256xf32>,
    %c1_i32 = arith.constant 1 : i32
    %61 = arith.index_cast %c1_i32 : i32 to index
    %c0_22 = arith.constant 0 : index
    %c0_23 = arith.constant 0 : index
    %62 = vector.load %arg1[%61, %c0_22, %c0_23] : memref<2x4x256xf32, #tpu.memory_space<vmem>>, vector<1x4x256xf32>
    %63 = vector.shape_cast %62 : vector<1x4x256xf32> to vector<4x256xf32>
    %c34_i32_24 = arith.constant 34 : i32
    %64 = tpu.dynamic_rotate %63 by %c34_i32_24 dim 1 : vector<4x256xf32>, i32 -> vector<4x256xf32>
    %65 = vector.extract_strided_slice %7 {offsets = [0, 0, 0], sizes = [1, 4, 256], strides = [1, 1, 1]} : vector<9x4x256xf32> to vector<1x4x256xf32>
    %66 = vector.shape_cast %65 : vector<1x4x256xf32> to vector<4x256xf32>
    %67 = arith.mulf %64, %66 : vector<4x256xf32>
    %c0_25 = arith.constant 0 : index
    %c0_26 = arith.constant 0 : index
    %68 = vector.load %arg5[%c0_25, %c0_26] : memref<80x256xf32, #tpu.memory_space<vmem>>, vector<4x256xf32>
    tpu.vector_store %arg5[%c0_25, %c0_26], %67 {strides = array<i32>} : memref<80x256xf32, #tpu.memory_space<vmem>>, vector<4x256xf32>,
    %c32_i32_27 = arith.constant 32 : i32
    %69 = tpu.dynamic_rotate %63 by %c32_i32_27 dim 1 : vector<4x256xf32>, i32 -> vector<4x256xf32>
    %70 = vector.extract_strided_slice %7 {offsets = [1, 0, 0], sizes = [1, 4, 256], strides = [1, 1, 1]} : vector<9x4x256xf32> to vector<1x4x256xf32>
    %71 = vector.shape_cast %70 : vector<1x4x256xf32> to vector<4x256xf32>
    %72 = arith.mulf %69, %71 : vector<4x256xf32>
    %c8_28 = arith.constant 8 : index
    %c0_29 = arith.constant 0 : index
    %73 = vector.load %arg5[%c8_28, %c0_29] : memref<80x256xf32, #tpu.memory_space<vmem>>, vector<4x256xf32>
    tpu.vector_store %arg5[%c8_28, %c0_29], %72 {strides = array<i32>} : memref<80x256xf32, #tpu.memory_space<vmem>>, vector<4x256xf32>,
    %c30_i32_30 = arith.constant 30 : i32
    %74 = tpu.dynamic_rotate %63 by %c30_i32_30 dim 1 : vector<4x256xf32>, i32 -> vector<4x256xf32>
    %75 = vector.extract_strided_slice %7 {offsets = [2, 0, 0], sizes = [1, 4, 256], strides = [1, 1, 1]} : vector<9x4x256xf32> to vector<1x4x256xf32>
    %76 = vector.shape_cast %75 : vector<1x4x256xf32> to vector<4x256xf32>
    %77 = arith.mulf %74, %76 : vector<4x256xf32>
    %c16_31 = arith.constant 16 : index
    %c0_32 = arith.constant 0 : index
    %78 = vector.load %arg5[%c16_31, %c0_32] : memref<80x256xf32, #tpu.memory_space<vmem>>, vector<4x256xf32>
    tpu.vector_store %arg5[%c16_31, %c0_32], %77 {strides = array<i32>} : memref<80x256xf32, #tpu.memory_space<vmem>>, vector<4x256xf32>,
    %c2_i32_33 = arith.constant 2 : i32
    %79 = tpu.dynamic_rotate %63 by %c2_i32_33 dim 1 : vector<4x256xf32>, i32 -> vector<4x256xf32>
    %80 = vector.extract_strided_slice %7 {offsets = [3, 0, 0], sizes = [1, 4, 256], strides = [1, 1, 1]} : vector<9x4x256xf32> to vector<1x4x256xf32>
    %81 = vector.shape_cast %80 : vector<1x4x256xf32> to vector<4x256xf32>
    %82 = arith.mulf %79, %81 : vector<4x256xf32>
    %c24_34 = arith.constant 24 : index
    %c0_35 = arith.constant 0 : index
    %83 = vector.load %arg5[%c24_34, %c0_35] : memref<80x256xf32, #tpu.memory_space<vmem>>, vector<4x256xf32>
    tpu.vector_store %arg5[%c24_34, %c0_35], %82 {strides = array<i32>} : memref<80x256xf32, #tpu.memory_space<vmem>>, vector<4x256xf32>,
    %84 = vector.extract_strided_slice %7 {offsets = [4, 0, 0], sizes = [1, 4, 256], strides = [1, 1, 1]} : vector<9x4x256xf32> to vector<1x4x256xf32>
    %85 = vector.shape_cast %84 : vector<1x4x256xf32> to vector<4x256xf32>
    %86 = arith.mulf %63, %85 : vector<4x256xf32>
    %c32_36 = arith.constant 32 : index
    %c0_37 = arith.constant 0 : index
    %87 = vector.load %arg5[%c32_36, %c0_37] : memref<80x256xf32, #tpu.memory_space<vmem>>, vector<4x256xf32>
    tpu.vector_store %arg5[%c32_36, %c0_37], %86 {strides = array<i32>} : memref<80x256xf32, #tpu.memory_space<vmem>>, vector<4x256xf32>,
    %c254_i32_38 = arith.constant 254 : i32
    %88 = tpu.dynamic_rotate %63 by %c254_i32_38 dim 1 : vector<4x256xf32>, i32 -> vector<4x256xf32>
    %89 = vector.extract_strided_slice %7 {offsets = [5, 0, 0], sizes = [1, 4, 256], strides = [1, 1, 1]} : vector<9x4x256xf32> to vector<1x4x256xf32>
    %90 = vector.shape_cast %89 : vector<1x4x256xf32> to vector<4x256xf32>
    %91 = arith.mulf %88, %90 : vector<4x256xf32>
    %c40_39 = arith.constant 40 : index
    %c0_40 = arith.constant 0 : index
    %92 = vector.load %arg5[%c40_39, %c0_40] : memref<80x256xf32, #tpu.memory_space<vmem>>, vector<4x256xf32>
    tpu.vector_store %arg5[%c40_39, %c0_40], %91 {strides = array<i32>} : memref<80x256xf32, #tpu.memory_space<vmem>>, vector<4x256xf32>,
    %c226_i32_41 = arith.constant 226 : i32
    %93 = tpu.dynamic_rotate %63 by %c226_i32_41 dim 1 : vector<4x256xf32>, i32 -> vector<4x256xf32>
    %94 = vector.extract_strided_slice %7 {offsets = [6, 0, 0], sizes = [1, 4, 256], strides = [1, 1, 1]} : vector<9x4x256xf32> to vector<1x4x256xf32>
    %95 = vector.shape_cast %94 : vector<1x4x256xf32> to vector<4x256xf32>
    %96 = arith.mulf %93, %95 : vector<4x256xf32>
    %c48_42 = arith.constant 48 : index
    %c0_43 = arith.constant 0 : index
    %97 = vector.load %arg5[%c48_42, %c0_43] : memref<80x256xf32, #tpu.memory_space<vmem>>, vector<4x256xf32>
    tpu.vector_store %arg5[%c48_42, %c0_43], %96 {strides = array<i32>} : memref<80x256xf32, #tpu.memory_space<vmem>>, vector<4x256xf32>,
    %c224_i32_44 = arith.constant 224 : i32
    %98 = tpu.dynamic_rotate %63 by %c224_i32_44 dim 1 : vector<4x256xf32>, i32 -> vector<4x256xf32>
    %99 = vector.extract_strided_slice %7 {offsets = [7, 0, 0], sizes = [1, 4, 256], strides = [1, 1, 1]} : vector<9x4x256xf32> to vector<1x4x256xf32>
    %100 = vector.shape_cast %99 : vector<1x4x256xf32> to vector<4x256xf32>
    %101 = arith.mulf %98, %100 : vector<4x256xf32>
    %c56_45 = arith.constant 56 : index
    %c0_46 = arith.constant 0 : index
    %102 = vector.load %arg5[%c56_45, %c0_46] : memref<80x256xf32, #tpu.memory_space<vmem>>, vector<4x256xf32>
    tpu.vector_store %arg5[%c56_45, %c0_46], %101 {strides = array<i32>} : memref<80x256xf32, #tpu.memory_space<vmem>>, vector<4x256xf32>,
    %c222_i32_47 = arith.constant 222 : i32
    %103 = tpu.dynamic_rotate %63 by %c222_i32_47 dim 1 : vector<4x256xf32>, i32 -> vector<4x256xf32>
    %104 = vector.extract_strided_slice %7 {offsets = [8, 0, 0], sizes = [1, 4, 256], strides = [1, 1, 1]} : vector<9x4x256xf32> to vector<1x4x256xf32>
    %105 = vector.shape_cast %104 : vector<1x4x256xf32> to vector<4x256xf32>
    %106 = arith.mulf %103, %105 : vector<4x256xf32>
    %c64_48 = arith.constant 64 : index
    %c0_49 = arith.constant 0 : index
    %107 = vector.load %arg5[%c64_48, %c0_49] : memref<80x256xf32, #tpu.memory_space<vmem>>, vector<4x256xf32>
    tpu.vector_store %arg5[%c64_48, %c0_49], %106 {strides = array<i32>} : memref<80x256xf32, #tpu.memory_space<vmem>>, vector<4x256xf32>,
    %c0_50 = arith.constant 0 : index
    %c0_51 = arith.constant 0 : index
    %108 = vector.load %arg5[%c0_50, %c0_51] : memref<80x256xf32, #tpu.memory_space<vmem>>, vector<80x256xf32>
    %cst_52 = arith.constant dense<0.000000e+00> : vector<4x256xf32>
    %109 = tpu.matmul %6, %108, %cst_52 {dimension_numbers = #tpu.dot_dimension_numbers<[1], [0], [0], [1], [0, 0, 1, 1], [], []>} : vector<4x80xf32>, vector<80x256xf32>, vector<4x256xf32> -> vector<4x256xf32>
    %110 = arith.index_cast %c1_i32 : i32 to index
    %c0_53 = arith.constant 0 : index
    %c0_54 = arith.constant 0 : index
    %111 = vector.load %arg4[%110, %c0_53, %c0_54] : memref<2x4x256xf32, #tpu.memory_space<vmem>>, vector<1x4x256xf32>
    %112 = vector.shape_cast %111 : vector<1x4x256xf32> to vector<4x256xf32>
    %113 = vector.shape_cast %109 : vector<4x256xf32> to vector<1x4x256xf32>
    tpu.vector_store %arg4[%110, %c0_53, %c0_54], %113 {strides = array<i32>} : memref<2x4x256xf32, #tpu.memory_space<vmem>>, vector<1x4x256xf32>,
    %c2_i32_55 = arith.constant 2 : i32
    return
  }
  func.func @transform_0(%arg0: i32) -> (i32, i32, i32) {
    %c0_i32 = arith.constant 0 : i32
    %c0_i32_0 = arith.constant 0 : i32
    %c0_i32_1 = arith.constant 0 : i32
    return %arg0, %c0_i32, %c0_i32_0 : i32, i32, i32
  }
  func.func @transform_1(%arg0: i32) -> (i32, i32) {
    %c0_i32 = arith.constant 0 : i32
    %c0_i32_0 = arith.constant 0 : i32
    %c0_i32_1 = arith.constant 0 : i32
    return %c0_i32, %c0_i32_0 : i32, i32
  }
  func.func @transform_2(%arg0: i32) -> (i32, i32, i32) {
    %c0_i32 = arith.constant 0 : i32
    %c0_i32_0 = arith.constant 0 : i32
    %c0_i32_1 = arith.constant 0 : i32
    %c0_i32_2 = arith.constant 0 : i32
    return %c0_i32, %c0_i32_0, %c0_i32_1 : i32, i32, i32
  }
  func.func @transform_3(%arg0: i32) -> (i32, i32, i32) {
    %c0_i32 = arith.constant 0 : i32
    %c0_i32_0 = arith.constant 0 : i32
    %c0_i32_1 = arith.constant 0 : i32
    return %arg0, %c0_i32, %c0_i32_0 : i32, i32, i32
  }
}

</mosaic_0001>

<llo_original>
// kernel: tpu_custom_call.1
$region0: #{tpu_custom_call.1}
  #allocation0 [shape = 'u32[]', space=smem, size = 0x4, offset = 0x4, fixed_abs, tag = 'smem constant byte address 0x4 - core index']
  #allocation1 [shape = 'u32[72,128]{1,0:T(1,128)}', space=vmem, size = 0x9000, scoped, tag = 'internal scratch']
  #allocation2 [shape = 'f32[80,256]{1,0:T(8,128)}', space=vmem, size = 0x14000, scoped, tag = 'scratch operand']
  %s0 = inlined_call_operand.hbm [shape: f32[2,4,256], index: 0, kind: input, shape index: {}]
  %s1 = inlined_call_operand.hbm [shape: f32[4,80], index: 1, kind: input, shape index: {}]
  %s2 = inlined_call_operand.hbm [shape: f32[9,4,256], index: 2, kind: input, shape index: {}]
  %s3 = inlined_call_operand.hbm [shape: f32[2,4,256], index: 3, kind: output, shape index: {}]
  %s4 = sld [smem:[#allocation0]]
  $region34: #{tpu_custom_call.1} parent=0
    _
  %s6 = ssub.s32 1, %s4
  %s7 = scalar_select 0, %s6, %s4
  $region1: #{tpu_custom_call.1} parent=0
    #allocation3 [shape = 'u8[8192]{0}', space=vmem, size = 0x2000, scoped, tag = 'input window, operand 0, single buffered']
    #allocation4 [shape = 's32[1]{0}', space=sflag, size = 0x4, scoped, tag = 'scoped memory for tpu_custom_call.1']
    #allocation5 [shape = 's32[1]{0}', space=sflag, size = 0x4, scoped, tag = 'scoped memory for tpu_custom_call.1']
    #allocation6 [shape = 'u8[2048]{0}', space=vmem, size = 0x800, scoped, tag = 'input window, operand 1, single buffered']
    #allocation7 [shape = 's32[1]{0}', space=sflag, size = 0x4, scoped, tag = 'scoped memory for tpu_custom_call.1']
    #allocation8 [shape = 'u8[36864]{0}', space=vmem, size = 0x9000, scoped, tag = 'input window, operand 2, single buffered']
    #allocation9 [shape = 'u8[8192]{0}', space=vmem, size = 0x2000, scoped, tag = 'output window, operand 0, single buffered']
    %8 = vsyncpa [#allocation4], 0
    %9 = vsyncpa [#allocation7], 0
    %10 = vsyncpa [#allocation5], 0
    // Predicated region
    $region2: #{tpu_custom_call.1} parent=1 // pred_check
      _
    $region3: #{tpu_custom_call.1} parent=1 // pred_check_branch
      %12 = sbr.rel (0) target = $region5
    $region4: #{tpu_custom_call.1} parent=1 // pred_region
      %14 = vsyncadd [#allocation4], 0
      %s15 = sshll.u32 %s0, 4
      %s16 = int_to_ptr.hbm [resolvable:$true] %s15
      %s17 = sshll.u32 [#allocation3], 4
      %s18 = int_to_ptr.vmem [resolvable:$true] %s17
      %23 = dma.hbm_to_vmem [thread:$0]  %s16, 256, %s18, [#allocation4], 128, 128, 8
    $region5: #{tpu_custom_call.1} parent=1 // pred_fallthru
      _
    // Predicated region
    $region6: #{tpu_custom_call.1} parent=1 // pred_check
      _
    $region7: #{tpu_custom_call.1} parent=1 // pred_check_branch
      %25 = sbr.rel (0) target = $region9
    $region8: #{tpu_custom_call.1} parent=1 // pred_region
      %27 = vsyncadd [#allocation7], 0
      %s29 = sshll.u32 %s1, 4
      %s30 = int_to_ptr.hbm [resolvable:$true] %s29
      %s31 = sshll.u32 [#allocation6], 4
      %s32 = int_to_ptr.vmem [resolvable:$true] %s31
      %34 = dma.hbm_to_vmem [thread:$0]  %s30, 64, %s32, [#allocation7]
    $region9: #{tpu_custom_call.1} parent=1 // pred_fallthru
      _
    // Predicated region
    $region10: #{tpu_custom_call.1} parent=1 // pred_check
      _
    $region11: #{tpu_custom_call.1} parent=1 // pred_check_branch
      %36 = sbr.rel (0) target = $region13
    $region12: #{tpu_custom_call.1} parent=1 // pred_region
      %38 = vsyncadd [#allocation7], 0
      %s39 = sshll.u32 %s2, 4
      %s40 = int_to_ptr.hbm [resolvable:$true] %s39
      %s41 = sshll.u32 [#allocation8], 4
      %s42 = int_to_ptr.vmem [resolvable:$true] %s41
      %47 = dma.hbm_to_vmem [thread:$0]  %s40, 1152, %s42, [#allocation7], 128, 128, 8
    $region13: #{tpu_custom_call.1} parent=1 // pred_fallthru
      _
    // Predicated region
    $region14: #{tpu_custom_call.1} parent=1 // pred_check
      _
    $region15: #{tpu_custom_call.1} parent=1 // pred_check_branch
      %49 = sbr.rel (0) target = $region17
    $region16: #{tpu_custom_call.1} parent=1 // pred_region
      %51 = dma.done [#allocation4], 256
    $region17: #{tpu_custom_call.1} parent=1 // pred_fallthru
      _
    // Predicated region
    $region18: #{tpu_custom_call.1} parent=1 // pred_check
      _
    $region19: #{tpu_custom_call.1} parent=1 // pred_check_branch
      %53 = sbr.rel (0) target = $region21
    $region20: #{tpu_custom_call.1} parent=1 // pred_region
      %55 = dma.done [#allocation7], 64
    $region21: #{tpu_custom_call.1} parent=1 // pred_fallthru
      _
    // Predicated region
    $region22: #{tpu_custom_call.1} parent=1 // pred_check
      _
    $region23: #{tpu_custom_call.1} parent=1 // pred_check_branch
      %57 = sbr.rel (0) target = $region25
    $region24: #{tpu_custom_call.1} parent=1 // pred_region
      %59 = dma.done [#allocation7], 1152
    $region25: #{tpu_custom_call.1} parent=1 // pred_fallthru
      _
    %v60 = vlaneseq
    %v61 = vshrl.u32 %v60, 7
    %v62 = vadd.s32 %v61, 8
    %v63 = vadd.s32 %v61, 16
    %v64 = vadd.s32 %v61, 24
    %v65 = vadd.s32 %v61, 32
    %v66 = vadd.s32 %v61, 40
    %v67 = vadd.s32 %v61, 48
    %v68 = vadd.s32 %v61, 56
    %v69 = vadd.s32 %v61, 64
    %v70 = vadd.s32 %v61, 72
    %vm71 = vcmp.eq.s32.totalorder %v61, 72
    %vm72 = vcmp.eq.s32.totalorder %v62, 72
    %vm73 = vcmp.eq.s32.totalorder %v63, 72
    %vm74 = vcmp.eq.s32.totalorder %v64, 72
    %vm75 = vcmp.eq.s32.totalorder %v65, 72
    %vm76 = vcmp.eq.s32.totalorder %v66, 72
    %vm77 = vcmp.eq.s32.totalorder %v67, 72
    %vm78 = vcmp.eq.s32.totalorder %v68, 72
    %vm79 = vcmp.eq.s32.totalorder %v69, 72
    %vm80 = vcmp.eq.s32.totalorder %v70, 72
    %v81 = vsel %vm71, 1, 0
    %v82 = vsel %vm72, 1, 0
    %v83 = vsel %vm73, 1, 0
    %v84 = vsel %vm74, 1, 0
    %v85 = vsel %vm75, 1, 0
    %v86 = vsel %vm76, 1, 0
    %v87 = vsel %vm77, 1, 0
    %v88 = vsel %vm78, 1, 0
    %v89 = vsel %vm79, 1, 0
    %v90 = vsel %vm80, 1, 0
    %v91 = vcvt.s32.f32 %v81
    %v92 = vcvt.s32.f32 %v82
    %v93 = vcvt.s32.f32 %v83
    %v94 = vcvt.s32.f32 %v84
    %v95 = vcvt.s32.f32 %v85
    %v96 = vcvt.s32.f32 %v86
    %v97 = vcvt.s32.f32 %v87
    %v98 = vcvt.s32.f32 %v88
    %v99 = vcvt.s32.f32 %v89
    %v100 = vcvt.s32.f32 %v90
    %101 = vst [vmem:[#allocation2] sm:$0xff] %v91
    %102 = vst [vmem:[#allocation2 + $0x8] sm:$0xff] %v91
    %103 = vst [vmem:[#allocation2 + $0x10] sm:$0xff] %v92
    %104 = vst [vmem:[#allocation2 + $0x18] sm:$0xff] %v92
    %105 = vst [vmem:[#allocation2 + $0x20] sm:$0xff] %v93
    %106 = vst [vmem:[#allocation2 + $0x28] sm:$0xff] %v93
    %107 = vst [vmem:[#allocation2 + $0x30] sm:$0xff] %v94
    %108 = vst [vmem:[#allocation2 + $0x38] sm:$0xff] %v94
    %109 = vst [vmem:[#allocation2 + $0x40] sm:$0xff] %v95
    %110 = vst [vmem:[#allocation2 + $0x48] sm:$0xff] %v95
    %111 = vst [vmem:[#allocation2 + $0x50] sm:$0xff] %v96
    %112 = vst [vmem:[#allocation2 + $0x58] sm:$0xff] %v96
    %113 = vst [vmem:[#allocation2 + $0x60] sm:$0xff] %v97
    %114 = vst [vmem:[#allocation2 + $0x68] sm:$0xff] %v97
    %115 = vst [vmem:[#allocation2 + $0x70] sm:$0xff] %v98
    %116 = vst [vmem:[#allocation2 + $0x78] sm:$0xff] %v98
    %117 = vst [vmem:[#allocation2 + $0x80] sm:$0xff] %v99
    %118 = vst [vmem:[#allocation2 + $0x88] sm:$0xff] %v99
    %119 = vst [vmem:[#allocation2 + $0x90] sm:$0xff] %v100
    %120 = vst [vmem:[#allocation2 + $0x98] sm:$0xff] %v100
    %v121 = vld [vmem:[#allocation6] sm:$0xf]
    %v122 = vld [vmem:[#allocation8] sm:$0xff]
    %v123 = vld [vmem:[#allocation8 + $0x8] sm:$0xff]
    %v124 = vld [vmem:[#allocation8 + $0x10] sm:$0xff]
    %v125 = vld [vmem:[#allocation8 + $0x18] sm:$0xff]
    %v126 = vld [vmem:[#allocation8 + $0x20] sm:$0xff]
    %v127 = vld [vmem:[#allocation8 + $0x28] sm:$0xff]
    %v128 = vld [vmem:[#allocation8 + $0x30] sm:$0xff]
    %v129 = vld [vmem:[#allocation8 + $0x38] sm:$0xff]
    %v130 = vld [vmem:[#allocation8 + $0x40] sm:$0xff]
    %v131 = vld [vmem:[#allocation3] sm:$0xff]
    %133 = vst [vmem:[#allocation1] ss:$2 sm:$0xff] %v131
    %v134 = vld.sshfl [vmem:[#allocation1] sm:$0xff pattern:$0x75316420]
    %v135 = vld.sshfl [vmem:[#allocation1 + $0x8] sm:$0xff pattern:$0x75316420]
    %138 = vrot.lane.b32.xlu0 %v134, 34
    %v139 = vpop.permute.xlu0 %138
    %140 = vrot.lane.b32.xlu0 %v135, 34
    %v141 = vpop.permute.xlu0 %140
    %v142 = vlaneseq
    %v143 = vand.u32 %v142, 127
    %vm144 = vcmp.lt.s32.totalorder %v143, 34
    %v145 = vsel %vm144, %v139, %v141
    %v146 = vsel %vm144, %v141, %v139
    %148 = vst [vmem:[#allocation1] ss:$2 sm:$0xff] %v122
    %v149 = vld.sshfl [vmem:[#allocation1] sm:$0xff pattern:$0x75316420]
    %v150 = vld.sshfl [vmem:[#allocation1 + $0x8] sm:$0xff pattern:$0x75316420]
    %v153 = vmul.f32 %v146, %v149
    %v154 = vmul.f32 %v145, %v150
    %155 = vst [vmem:[#allocation2] sm:$0xf] %v153
    %156 = vst [vmem:[#allocation2 + $0x8] sm:$0xf] %v154
    %157 = vst [vmem:[#allocation1] ss:$2 sm:$0xff] %v131
    %v158 = vld.sshfl [vmem:[#allocation1] sm:$0xff pattern:$0x75316420]
    %v159 = vld.sshfl [vmem:[#allocation1 + $0x8] sm:$0xff pattern:$0x75316420]
    %162 = vrot.lane.b32.xlu0 %v158, 32
    %v163 = vpop.permute.xlu0 %162
    %164 = vrot.lane.b32.xlu0 %v159, 32
    %v165 = vpop.permute.xlu0 %164
    %vm166 = vcmp.lt.s32.totalorder %v143, 32
    %v167 = vsel %vm166, %v163, %v165
    %v168 = vsel %vm166, %v165, %v163
    %170 = vst [vmem:[#allocation1] ss:$2 sm:$0xff] %v123
    %v171 = vld.sshfl [vmem:[#allocation1] sm:$0xff pattern:$0x75316420]
    %v172 = vld.sshfl [vmem:[#allocation1 + $0x8] sm:$0xff pattern:$0x75316420]
    %v175 = vmul.f32 %v168, %v171
    %v176 = vmul.f32 %v167, %v172
    %177 = vst [vmem:[#allocation2 + $0x10] sm:$0xf] %v175
    %178 = vst [vmem:[#allocation2 + $0x18] sm:$0xf] %v176
    %179 = vst [vmem:[#allocation1] ss:$2 sm:$0xff] %v131
    %v180 = vld.sshfl [vmem:[#allocation1] sm:$0xff pattern:$0x75316420]
    %v181 = vld.sshfl [vmem:[#allocation1 + $0x8] sm:$0xff pattern:$0x75316420]
    %184 = vrot.lane.b32.xlu0 %v180, 30
    %v185 = vpop.permute.xlu0 %184
    %186 = vrot.lane.b32.xlu0 %v181, 30
    %v187 = vpop.permute.xlu0 %186
    %vm188 = vcmp.lt.s32.totalorder %v143, 30
    %v189 = vsel %vm188, %v185, %v187
    %v190 = vsel %vm188, %v187, %v185
    %192 = vst [vmem:[#allocation1] ss:$2 sm:$0xff] %v124
    %v193 = vld.sshfl [vmem:[#allocation1] sm:$0xff pattern:$0x75316420]
    %v194 = vld.sshfl [vmem:[#allocation1 + $0x8] sm:$0xff pattern:$0x75316420]
    %v197 = vmul.f32 %v190, %v193
    %v198 = vmul.f32 %v189, %v194
    %199 = vst [vmem:[#allocation2 + $0x20] sm:$0xf] %v197
    %200 = vst [vmem:[#allocation2 + $0x28] sm:$0xf] %v198
    %201 = vst [vmem:[#allocation1] ss:$2 sm:$0xff] %v131
    %v202 = vld.sshfl [vmem:[#allocation1] sm:$0xff pattern:$0x75316420]
    %v203 = vld.sshfl [vmem:[#allocation1 + $0x8] sm:$0xff pattern:$0x75316420]
    %206 = vrot.lane.b32.xlu0 %v202, 2
    %v207 = vpop.permute.xlu0 %206
    %208 = vrot.lane.b32.xlu0 %v203, 2
    %v209 = vpop.permute.xlu0 %208
    %vm210 = vcmp.lt.s32.totalorder %v143, 2
    %v211 = vsel %vm210, %v207, %v209
    %v212 = vsel %vm210, %v209, %v207
    %214 = vst [vmem:[#allocation1] ss:$2 sm:$0xff] %v125
    %v215 = vld.sshfl [vmem:[#allocation1] sm:$0xff pattern:$0x75316420]
    %v216 = vld.sshfl [vmem:[#allocation1 + $0x8] sm:$0xff pattern:$0x75316420]
    %v219 = vmul.f32 %v212, %v215
    %v220 = vmul.f32 %v211, %v216
    %221 = vst [vmem:[#allocation2 + $0x30] sm:$0xf] %v219
    %222 = vst [vmem:[#allocation2 + $0x38] sm:$0xf] %v220
    %v223 = vmul.f32 %v131, %v126
    %225 = vst [vmem:[#allocation1] ss:$2 sm:$0xff] %v223
    %v226 = vld.sshfl [vmem:[#allocation1] sm:$0xff pattern:$0x75316420]
    %v227 = vld.sshfl [vmem:[#allocation1 + $0x8] sm:$0xff pattern:$0x75316420]
    %230 = vst [vmem:[#allocation2 + $0x40] sm:$0xf] %v226
    %231 = vst [vmem:[#allocation2 + $0x48] sm:$0xf] %v227
    %232 = vst [vmem:[#allocation1] ss:$2 sm:$0xff] %v131
    %v233 = vld.sshfl [vmem:[#allocation1] sm:$0xff pattern:$0x75316420]
    %v234 = vld.sshfl [vmem:[#allocation1 + $0x8] sm:$0xff pattern:$0x75316420]
    %237 = vrot.lane.b32.xlu0 %v233, 126
    %v238 = vpop.permute.xlu0 %237
    %239 = vrot.lane.b32.xlu0 %v234, 126
    %v240 = vpop.permute.xlu0 %239
    %vm241 = vcmp.lt.s32.totalorder %v143, 126
    %v242 = vsel %vm241, %v238, %v240
    %v243 = vsel %vm241, %v240, %v238
    %245 = vst [vmem:[#allocation1] ss:$2 sm:$0xff] %v127
    %v246 = vld.sshfl [vmem:[#allocation1] sm:$0xff pattern:$0x75316420]
    %v247 = vld.sshfl [vmem:[#allocation1 + $0x8] sm:$0xff pattern:$0x75316420]
    %v250 = vmul.f32 %v242, %v246
    %v251 = vmul.f32 %v243, %v247
    %252 = vst [vmem:[#allocation2 + $0x50] sm:$0xf] %v250
    %253 = vst [vmem:[#allocation2 + $0x58] sm:$0xf] %v251
    %254 = vst [vmem:[#allocation1] ss:$2 sm:$0xff] %v131
    %v255 = vld.sshfl [vmem:[#allocation1] sm:$0xff pattern:$0x75316420]
    %v256 = vld.sshfl [vmem:[#allocation1 + $0x8] sm:$0xff pattern:$0x75316420]
    %259 = vrot.lane.b32.xlu0 %v255, 98
    %v260 = vpop.permute.xlu0 %259
    %261 = vrot.lane.b32.xlu0 %v256, 98
    %v262 = vpop.permute.xlu0 %261
    %vm263 = vcmp.lt.s32.totalorder %v143, 98
    %v264 = vsel %vm263, %v260, %v262
    %v265 = vsel %vm263, %v262, %v260
    %267 = vst [vmem:[#allocation1] ss:$2 sm:$0xff] %v128
    %v268 = vld.sshfl [vmem:[#allocation1] sm:$0xff pattern:$0x75316420]
    %v269 = vld.sshfl [vmem:[#allocation1 + $0x8] sm:$0xff pattern:$0x75316420]
    %v272 = vmul.f32 %v264, %v268
    %v273 = vmul.f32 %v265, %v269
    %274 = vst [vmem:[#allocation2 + $0x60] sm:$0xf] %v272
    %275 = vst [vmem:[#allocation2 + $0x68] sm:$0xf] %v273
    %276 = vst [vmem:[#allocation1] ss:$2 sm:$0xff] %v131
    %v277 = vld.sshfl [vmem:[#allocation1] sm:$0xff pattern:$0x75316420]
    %v278 = vld.sshfl [vmem:[#allocation1 + $0x8] sm:$0xff pattern:$0x75316420]
    %281 = vrot.lane.b32.xlu0 %v277, 96
    %v282 = vpop.permute.xlu0 %281
    %283 = vrot.lane.b32.xlu0 %v278, 96
    %v284 = vpop.permute.xlu0 %283
    %vm285 = vcmp.lt.s32.totalorder %v143, 96
    %v286 = vsel %vm285, %v282, %v284
    %v287 = vsel %vm285, %v284, %v282
    %289 = vst [vmem:[#allocation1] ss:$2 sm:$0xff] %v129
    %v290 = vld.sshfl [vmem:[#allocation1] sm:$0xff pattern:$0x75316420]
    %v291 = vld.sshfl [vmem:[#allocation1 + $0x8] sm:$0xff pattern:$0x75316420]
    %v294 = vmul.f32 %v286, %v290
    %v295 = vmul.f32 %v287, %v291
    %296 = vst [vmem:[#allocation2 + $0x70] sm:$0xf] %v294
    %297 = vst [vmem:[#allocation2 + $0x78] sm:$0xf] %v295
    %298 = vst [vmem:[#allocation1] ss:$2 sm:$0xff] %v131
    %v299 = vld.sshfl [vmem:[#allocation1] sm:$0xff pattern:$0x75316420]
    %v300 = vld.sshfl [vmem:[#allocation1 + $0x8] sm:$0xff pattern:$0x75316420]
    %303 = vrot.lane.b32.xlu0 %v299, 94
    %v304 = vpop.permute.xlu0 %303
    %305 = vrot.lane.b32.xlu0 %v300, 94
    %v306 = vpop.permute.xlu0 %305
    %vm307 = vcmp.lt.s32.totalorder %v143, 94
    %v308 = vsel %vm307, %v304, %v306
    %v309 = vsel %vm307, %v306, %v304
    %311 = vst [vmem:[#allocation1] ss:$2 sm:$0xff] %v130
    %v312 = vld.sshfl [vmem:[#allocation1] sm:$0xff pattern:$0x75316420]
    %v313 = vld.sshfl [vmem:[#allocation1 + $0x8] sm:$0xff pattern:$0x75316420]
    %v316 = vmul.f32 %v308, %v312
    %v317 = vmul.f32 %v309, %v313
    %318 = vst [vmem:[#allocation2 + $0x80] sm:$0xf] %v316
    %319 = vst [vmem:[#allocation2 + $0x88] sm:$0xf] %v317
    %v320 = vld [vmem:[#allocation2] sm:$0xff]
    %v321 = vld [vmem:[#allocation2 + $0x8] sm:$0xff]
    %v322 = vld [vmem:[#allocation2 + $0x10] sm:$0xff]
    %v323 = vld [vmem:[#allocation2 + $0x18] sm:$0xff]
    %v324 = vld [vmem:[#allocation2 + $0x20] sm:$0xff]
    %v325 = vld [vmem:[#allocation2 + $0x28] sm:$0xff]
    %v326 = vld [vmem:[#allocation2 + $0x30] sm:$0xff]
    %v327 = vld [vmem:[#allocation2 + $0x38] sm:$0xff]
    %v328 = vld [vmem:[#allocation2 + $0x40] sm:$0xff]
    %v329 = vld [vmem:[#allocation2 + $0x48] sm:$0xff]
    %v330 = vld [vmem:[#allocation2 + $0x50] sm:$0xff]
    %v331 = vld [vmem:[#allocation2 + $0x58] sm:$0xff]
    %v332 = vld [vmem:[#allocation2 + $0x60] sm:$0xff]
    %v333 = vld [vmem:[#allocation2 + $0x68] sm:$0xff]
    %v334 = vld [vmem:[#allocation2 + $0x70] sm:$0xff]
    %v335 = vld [vmem:[#allocation2 + $0x78] sm:$0xff]
    %v336 = vld [vmem:[#allocation2 + $0x80] sm:$0xff]
    %v337 = vld [vmem:[#allocation2 + $0x88] sm:$0xff]
    %v338 = vld [vmem:[#allocation2 + $0x90] sm:$0xff]
    %v339 = vld [vmem:[#allocation2 + $0x98] sm:$0xff]
    %vm340 = vcmask 654336
    %v342 = vsel %vm340, %v121, 0
    %344 = vmatpush.msra.mxu0 0.0
    %345 = vmatpush.msra.mxu0 0.0
    %346 = vmatpush.msra.mxu0 0.0
    %347 = vmatpush.msra.mxu0 0.0
    %348 = vmatpush.msra.mxu0 0.0
    %349 = vmatpush.msra.mxu0 0.0
    %350 = vmatpush.msra.mxu0 %v338
    %351 = vmatpush.msra.mxu0 %v336
    %352 = vmatpush.msra.mxu0 %v334
    %353 = vmatpush.msra.mxu0 %v332
    %354 = vmatpush.msra.mxu0 %v330
    %355 = vmatpush.msra.mxu0 %v328
    %356 = vmatpush.msra.mxu0 %v326
    %357 = vmatpush.msra.mxu0 %v324
    %358 = vmatpush.msra.mxu0 %v322
    %359 = vmatpush.msra.mxu0 %v320
    %360 = vmatmul.f32.gmra.mxu0 %v342
    %v361 = vpop.f32.mrf.mxu0
    %v362 = vadd.f32 0.0, %v361
    %363 = vdwg.mxu0
    %364 = vmatpush.msra.mxu0 0.0
    %365 = vmatpush.msra.mxu0 0.0
    %366 = vmatpush.msra.mxu0 0.0
    %367 = vmatpush.msra.mxu0 0.0
    %368 = vmatpush.msra.mxu0 0.0
    %369 = vmatpush.msra.mxu0 0.0
    %370 = vmatpush.msra.mxu0 %v339
    %371 = vmatpush.msra.mxu0 %v337
    %372 = vmatpush.msra.mxu0 %v335
    %373 = vmatpush.msra.mxu0 %v333
    %374 = vmatpush.msra.mxu0 %v331
    %375 = vmatpush.msra.mxu0 %v329
    %376 = vmatpush.msra.mxu0 %v327
    %377 = vmatpush.msra.mxu0 %v325
    %378 = vmatpush.msra.mxu0 %v323
    %379 = vmatpush.msra.mxu0 %v321
    %380 = vmatmul.f32.gmra.mxu0 %v342
    %v381 = vpop.f32.mrf.mxu0
    %v382 = vadd.f32 0.0, %v381
    %383 = vdwg.mxu0
    %v386 = vrot.slane %v382, 4
    %vm387 = vcmask 1043456
    %v388 = vsel %vm387, %v362, %v386
    %390 = vst [vmem:[#allocation9] sm:$0xff] %v388
    %s391 = scalar_lea.vmem [#allocation3], 8
    %v392 = vld [vmem:[%s391] sm:$0xff]
    %394 = vst [vmem:[#allocation1] ss:$2 sm:$0xff] %v392
    %v395 = vld.sshfl [vmem:[#allocation1] sm:$0xff pattern:$0x75316420]
    %v396 = vld.sshfl [vmem:[#allocation1 + $0x8] sm:$0xff pattern:$0x75316420]
    %399 = vrot.lane.b32.xlu0 %v395, 34
    %v400 = vpop.permute.xlu0 %399
    %401 = vrot.lane.b32.xlu0 %v396, 34
    %v402 = vpop.permute.xlu0 %401
    %v403 = vsel %vm144, %v400, %v402
    %v404 = vsel %vm144, %v402, %v400
    %405 = vst [vmem:[#allocation1] ss:$2 sm:$0xff] %v122
    %v406 = vld.sshfl [vmem:[#allocation1] sm:$0xff pattern:$0x75316420]
    %v407 = vld.sshfl [vmem:[#allocation1 + $0x8] sm:$0xff pattern:$0x75316420]
    %v410 = vmul.f32 %v404, %v406
    %v411 = vmul.f32 %v403, %v407
    %412 = vst [vmem:[#allocation2] sm:$0xf] %v410
    %413 = vst [vmem:[#allocation2 + $0x8] sm:$0xf] %v411
    %414 = vst [vmem:[#allocation1] ss:$2 sm:$0xff] %v392
    %v415 = vld.sshfl [vmem:[#allocation1] sm:$0xff pattern:$0x75316420]
    %v416 = vld.sshfl [vmem:[#allocation1 + $0x8] sm:$0xff pattern:$0x75316420]
    %419 = vrot.lane.b32.xlu0 %v415, 32
    %v420 = vpop.permute.xlu0 %419
    %421 = vrot.lane.b32.xlu0 %v416, 32
    %v422 = vpop.permute.xlu0 %421
    %v423 = vsel %vm166, %v420, %v422
    %v424 = vsel %vm166, %v422, %v420
    %425 = vst [vmem:[#allocation1] ss:$2 sm:$0xff] %v123
    %v426 = vld.sshfl [vmem:[#allocation1] sm:$0xff pattern:$0x75316420]
    %v427 = vld.sshfl [vmem:[#allocation1 + $0x8] sm:$0xff pattern:$0x75316420]
    %v430 = vmul.f32 %v424, %v426
    %v431 = vmul.f32 %v423, %v427
    %432 = vst [vmem:[#allocation2 + $0x10] sm:$0xf] %v430
    %433 = vst [vmem:[#allocation2 + $0x18] sm:$0xf] %v431
    %434 = vst [vmem:[#allocation1] ss:$2 sm:$0xff] %v392
    %v435 = vld.sshfl [vmem:[#allocation1] sm:$0xff pattern:$0x75316420]
    %v436 = vld.sshfl [vmem:[#allocation1 + $0x8] sm:$0xff pattern:$0x75316420]
    %439 = vrot.lane.b32.xlu0 %v435, 30
    %v440 = vpop.permute.xlu0 %439
    %441 = vrot.lane.b32.xlu0 %v436, 30
    %v442 = vpop.permute.xlu0 %441
    %v443 = vsel %vm188, %v440, %v442
    %v444 = vsel %vm188, %v442, %v440
    %445 = vst [vmem:[#allocation1] ss:$2 sm:$0xff] %v124
    %v446 = vld.sshfl [vmem:[#allocation1] sm:$0xff pattern:$0x75316420]
    %v447 = vld.sshfl [vmem:[#allocation1 + $0x8] sm:$0xff pattern:$0x75316420]
    %v450 = vmul.f32 %v444, %v446
    %v451 = vmul.f32 %v443, %v447
    %452 = vst [vmem:[#allocation2 + $0x20] sm:$0xf] %v450
    %453 = vst [vmem:[#allocation2 + $0x28] sm:$0xf] %v451
    %454 = vst [vmem:[#allocation1] ss:$2 sm:$0xff] %v392
    %v455 = vld.sshfl [vmem:[#allocation1] sm:$0xff pattern:$0x75316420]
    %v456 = vld.sshfl [vmem:[#allocation1 + $0x8] sm:$0xff pattern:$0x75316420]
    %459 = vrot.lane.b32.xlu0 %v455, 2
    %v460 = vpop.permute.xlu0 %459
    %461 = vrot.lane.b32.xlu0 %v456, 2
    %v462 = vpop.permute.xlu0 %461
    %v463 = vsel %vm210, %v460, %v462
    %v464 = vsel %vm210, %v462, %v460
    %465 = vst [vmem:[#allocation1] ss:$2 sm:$0xff] %v125
    %v466 = vld.sshfl [vmem:[#allocation1] sm:$0xff pattern:$0x75316420]
    %v467 = vld.sshfl [vmem:[#allocation1 + $0x8] sm:$0xff pattern:$0x75316420]
    %v470 = vmul.f32 %v464, %v466
    %v471 = vmul.f32 %v463, %v467
    %472 = vst [vmem:[#allocation2 + $0x30] sm:$0xf] %v470
    %473 = vst [vmem:[#allocation2 + $0x38] sm:$0xf] %v471
    %v474 = vmul.f32 %v392, %v126
    %476 = vst [vmem:[#allocation1] ss:$2 sm:$0xff] %v474
    %v477 = vld.sshfl [vmem:[#allocation1] sm:$0xff pattern:$0x75316420]
    %v478 = vld.sshfl [vmem:[#allocation1 + $0x8] sm:$0xff pattern:$0x75316420]
    %481 = vst [vmem:[#allocation2 + $0x40] sm:$0xf] %v477
    %482 = vst [vmem:[#allocation2 + $0x48] sm:$0xf] %v478
    %483 = vst [vmem:[#allocation1] ss:$2 sm:$0xff] %v392
    %v484 = vld.sshfl [vmem:[#allocation1] sm:$0xff pattern:$0x75316420]
    %v485 = vld.sshfl [vmem:[#allocation1 + $0x8] sm:$0xff pattern:$0x75316420]
    %488 = vrot.lane.b32.xlu0 %v484, 126
    %v489 = vpop.permute.xlu0 %488
    %490 = vrot.lane.b32.xlu0 %v485, 126
    %v491 = vpop.permute.xlu0 %490
    %v492 = vsel %vm241, %v489, %v491
    %v493 = vsel %vm241, %v491, %v489
    %494 = vst [vmem:[#allocation1] ss:$2 sm:$0xff] %v127
    %v495 = vld.sshfl [vmem:[#allocation1] sm:$0xff pattern:$0x75316420]
    %v496 = vld.sshfl [vmem:[#allocation1 + $0x8] sm:$0xff pattern:$0x75316420]
    %v499 = vmul.f32 %v492, %v495
    %v500 = vmul.f32 %v493, %v496
    %501 = vst [vmem:[#allocation2 + $0x50] sm:$0xf] %v499
    %502 = vst [vmem:[#allocation2 + $0x58] sm:$0xf] %v500
    %503 = vst [vmem:[#allocation1] ss:$2 sm:$0xff] %v392
    %v504 = vld.sshfl [vmem:[#allocation1] sm:$0xff pattern:$0x75316420]
    %v505 = vld.sshfl [vmem:[#allocation1 + $0x8] sm:$0xff pattern:$0x75316420]
    %508 = vrot.lane.b32.xlu0 %v504, 98
    %v509 = vpop.permute.xlu0 %508
    %510 = vrot.lane.b32.xlu0 %v505, 98
    %v511 = vpop.permute.xlu0 %510
    %v512 = vsel %vm263, %v509, %v511
    %v513 = vsel %vm263, %v511, %v509
    %514 = vst [vmem:[#allocation1] ss:$2 sm:$0xff] %v128
    %v515 = vld.sshfl [vmem:[#allocation1] sm:$0xff pattern:$0x75316420]
    %v516 = vld.sshfl [vmem:[#allocation1 + $0x8] sm:$0xff pattern:$0x75316420]
    %v519 = vmul.f32 %v512, %v515
    %v520 = vmul.f32 %v513, %v516
    %521 = vst [vmem:[#allocation2 + $0x60] sm:$0xf] %v519
    %522 = vst [vmem:[#allocation2 + $0x68] sm:$0xf] %v520
    %523 = vst [vmem:[#allocation1] ss:$2 sm:$0xff] %v392
    %v524 = vld.sshfl [vmem:[#allocation1] sm:$0xff pattern:$0x75316420]
    %v525 = vld.sshfl [vmem:[#allocation1 + $0x8] sm:$0xff pattern:$0x75316420]
    %528 = vrot.lane.b32.xlu0 %v524, 96
    %v529 = vpop.permute.xlu0 %528
    %530 = vrot.lane.b32.xlu0 %v525, 96
    %v531 = vpop.permute.xlu0 %530
    %v532 = vsel %vm285, %v529, %v531
    %v533 = vsel %vm285, %v531, %v529
    %534 = vst [vmem:[#allocation1] ss:$2 sm:$0xff] %v129
    %v535 = vld.sshfl [vmem:[#allocation1] sm:$0xff pattern:$0x75316420]
    %v536 = vld.sshfl [vmem:[#allocation1 + $0x8] sm:$0xff pattern:$0x75316420]
    %v539 = vmul.f32 %v532, %v535
    %v540 = vmul.f32 %v533, %v536
    %541 = vst [vmem:[#allocation2 + $0x70] sm:$0xf] %v539
    %542 = vst [vmem:[#allocation2 + $0x78] sm:$0xf] %v540
    %543 = vst [vmem:[#allocation1] ss:$2 sm:$0xff] %v392
    %v544 = vld.sshfl [vmem:[#allocation1] sm:$0xff pattern:$0x75316420]
    %v545 = vld.sshfl [vmem:[#allocation1 + $0x8] sm:$0xff pattern:$0x75316420]
    %548 = vrot.lane.b32.xlu0 %v544, 94
    %v549 = vpop.permute.xlu0 %548
    %550 = vrot.lane.b32.xlu0 %v545, 94
    %v551 = vpop.permute.xlu0 %550
    %v552 = vsel %vm307, %v549, %v551
    %v553 = vsel %vm307, %v551, %v549
    %554 = vst [vmem:[#allocation1] ss:$2 sm:$0xff] %v130
    %v555 = vld.sshfl [vmem:[#allocation1] sm:$0xff pattern:$0x75316420]
    %v556 = vld.sshfl [vmem:[#allocation1 + $0x8] sm:$0xff pattern:$0x75316420]
    %v559 = vmul.f32 %v552, %v555
    %v560 = vmul.f32 %v553, %v556
    %561 = vst [vmem:[#allocation2 + $0x80] sm:$0xf] %v559
    %562 = vst [vmem:[#allocation2 + $0x88] sm:$0xf] %v560
    %v563 = vld [vmem:[#allocation2] sm:$0xff]
    %v564 = vld [vmem:[#allocation2 + $0x8] sm:$0xff]
    %v565 = vld [vmem:[#allocation2 + $0x10] sm:$0xff]
    %v566 = vld [vmem:[#allocation2 + $0x18] sm:$0xff]
    %v567 = vld [vmem:[#allocation2 + $0x20] sm:$0xff]
    %v568 = vld [vmem:[#allocation2 + $0x28] sm:$0xff]
    %v569 = vld [vmem:[#allocation2 + $0x30] sm:$0xff]
    %v570 = vld [vmem:[#allocation2 + $0x38] sm:$0xff]
    %v571 = vld [vmem:[#allocation2 + $0x40] sm:$0xff]
    %v572 = vld [vmem:[#allocation2 + $0x48] sm:$0xff]
    %v573 = vld [vmem:[#allocation2 + $0x50] sm:$0xff]
    %v574 = vld [vmem:[#allocation2 + $0x58] sm:$0xff]
    %v575 = vld [vmem:[#allocation2 + $0x60] sm:$0xff]
    %v576 = vld [vmem:[#allocation2 + $0x68] sm:$0xff]
    %v577 = vld [vmem:[#allocation2 + $0x70] sm:$0xff]
    %v578 = vld [vmem:[#allocation2 + $0x78] sm:$0xff]
    %v579 = vld [vmem:[#allocation2 + $0x80] sm:$0xff]
    %v580 = vld [vmem:[#allocation2 + $0x88] sm:$0xff]
    %v581 = vld [vmem:[#allocation2 + $0x90] sm:$0xff]
    %v582 = vld [vmem:[#allocation2 + $0x98] sm:$0xff]
    %583 = vmatpush.msra.mxu0 0.0
    %584 = vmatpush.msra.mxu0 0.0
    %585 = vmatpush.msra.mxu0 0.0
    %586 = vmatpush.msra.mxu0 0.0
    %587 = vmatpush.msra.mxu0 0.0
    %588 = vmatpush.msra.mxu0 0.0
    %589 = vmatpush.msra.mxu0 %v581
    %590 = vmatpush.msra.mxu0 %v579
    %591 = vmatpush.msra.mxu0 %v577
    %592 = vmatpush.msra.mxu0 %v575
    %593 = vmatpush.msra.mxu0 %v573
    %594 = vmatpush.msra.mxu0 %v571
    %595 = vmatpush.msra.mxu0 %v569
    %596 = vmatpush.msra.mxu0 %v567
    %597 = vmatpush.msra.mxu0 %v565
    %598 = vmatpush.msra.mxu0 %v563
    %599 = vmatmul.f32.gmra.mxu0 %v342
    %v600 = vpop.f32.mrf.mxu0
    %v601 = vadd.f32 0.0, %v600
    %602 = vdwg.mxu0
    %603 = vmatpush.msra.mxu0 0.0
    %604 = vmatpush.msra.mxu0 0.0
    %605 = vmatpush.msra.mxu0 0.0
    %606 = vmatpush.msra.mxu0 0.0
    %607 = vmatpush.msra.mxu0 0.0
    %608 = vmatpush.msra.mxu0 0.0
    %609 = vmatpush.msra.mxu0 %v582
    %610 = vmatpush.msra.mxu0 %v580
    %611 = vmatpush.msra.mxu0 %v578
    %612 = vmatpush.msra.mxu0 %v576
    %613 = vmatpush.msra.mxu0 %v574
    %614 = vmatpush.msra.mxu0 %v572
    %615 = vmatpush.msra.mxu0 %v570
    %616 = vmatpush.msra.mxu0 %v568
    %617 = vmatpush.msra.mxu0 %v566
    %618 = vmatpush.msra.mxu0 %v564
    %619 = vmatmul.f32.gmra.mxu0 %v342
    %v620 = vpop.f32.mrf.mxu0
    %v621 = vadd.f32 0.0, %v620
    %622 = vdwg.mxu0
    %v625 = vrot.slane %v621, 4
    %v626 = vsel %vm387, %v601, %v625
    %s628 = scalar_lea.vmem [#allocation9], 8
    %629 = vst [vmem:[%s628] sm:$0xff] %v626
    // Predicated region
    $region26: #{tpu_custom_call.1} parent=1 // pred_check
      _
    $region27: #{tpu_custom_call.1} parent=1 // pred_check_branch
      %631 = sbr.rel (0) target = $region29
    $region28: #{tpu_custom_call.1} parent=1 // pred_region
      %633 = vsyncadd [#allocation5], 0
      %s634 = sshll.u32 [#allocation9], 4
      %s635 = int_to_ptr.vmem [resolvable:$true] %s634
      %s636 = sshll.u32 %s3, 4
      %s637 = int_to_ptr.hbm [resolvable:$true] %s636
      %642 = dma.vmem_to_hbm [thread:$0]  %s635, 256, %s637, [#allocation5], 128, 128, 8
    $region29: #{tpu_custom_call.1} parent=1 // pred_fallthru
      _
    // Predicated region
    $region30: #{tpu_custom_call.1} parent=1 // pred_check
      _
    $region31: #{tpu_custom_call.1} parent=1 // pred_check_branch
      %644 = sbr.rel (0) target = $region33
    $region32: #{tpu_custom_call.1} parent=1 // pred_region
      %646 = dma.done [#allocation5], 256
    $region33: #{tpu_custom_call.1} parent=1 // pred_fallthru
      _
    %647 = vsyncpa [#allocation4], 1
    %648 = vsyncpa [#allocation7], 1
    %649 = vsyncpa [#allocation5], 1

</llo_original>
